<compile_context>
chip_gen: v7x
topology: tpu7x:2x2x1
jax: 0.10.0
libtpu: 0.0.40
codegen_flags: <defaults>
</compile_context>

<pallas_src>
import jax
import jax.numpy as jnp
from jax.experimental import pallas as pl
from jax.experimental.pallas import tpu as pltpu


def _round_up(n, m):
    return ((n + m - 1) // m) * m


def _vmem_limit(est_bytes):
    try:
        cap = int(pltpu.get_tpu_info().vmem_capacity_bytes)
    except Exception:
        cap = 64 * 1024 * 1024            # conservative: v7x per-TC VMEM
    want = max(8 * 1024 * 1024, int(1.25 * est_bytes))
    return int(min(int(0.9 * cap), want))


# ---------------------------------------------------------------------------
# Stage 1: fused bf16 input projection  gi = x @ [wxf | wxb] + bias
# grid over T ("parallel"); gib written time-reversed.
# ---------------------------------------------------------------------------
def elmo_proj_kernel(x_ref, wx_ref, bi_ref, gif_ref, gib_ref):
    g = gif_ref.shape[-1]                                  # 3 * Hp
    x = x_ref[0].astype(jnp.bfloat16)                      # (Bp, Ep)
    gi = jnp.dot(x, wx_ref[...],
                 preferred_element_type=jnp.float32) + bi_ref[...]
    gi = gi.astype(jnp.bfloat16)                           # (Bp, 6Hp)
    gif_ref[0] = gi[:, :g]
    gib_ref[0] = gi[:, g:]


# ---------------------------------------------------------------------------
# Stage 2: bi-GRU recurrence + relu(cat) + FC
# grid over T ("arbitrary"); hid output block is the resident state carrier.
# ---------------------------------------------------------------------------
def elmo_rec_kernel(lens_ref, gif_ref, gib_ref, h0f_ref, h0b_ref,
                    whf_ref, whb_ref, bhnf_ref, bhnb_ref,
                    wfc_ref, bfc_ref, out_ref, hid_ref):
    Hp = h0f_ref.shape[-1]
    t = pl.program_id(0)
    T = pl.num_programs(0)

    @pl.when(t == 0)
    def _():
        hid_ref[:, :Hp] = h0f_ref[...]
        hid_ref[:, Hp:] = h0b_ref[...]

    lens = lens_ref[...]                                   # (Bp, 1) int32
    hf = hid_ref[:, :Hp]                                   # resident state
    hb = hid_ref[:, Hp:]

    def cell(gi, h, wh_ref, bhn_ref):
        # Single fused (Bp,Hp)@(Hp,3Hp) matmul; lane-aligned gate slices.
        gh = jnp.dot(h, wh_ref[...], preferred_element_type=jnp.float32)
        r = jax.nn.sigmoid(gi[:, :Hp] + gh[:, :Hp])
        z = jax.nn.sigmoid(gi[:, Hp:2 * Hp] + gh[:, Hp:2 * Hp])
        n = jnp.tanh(gi[:, 2 * Hp:] + r * (gh[:, 2 * Hp:] + bhn_ref[...]))
        return (1.0 - z) * n + z * h

    gi_f = gif_ref[0].astype(jnp.float32)                  # (Bp, 3Hp)
    gi_b = gib_ref[0].astype(jnp.float32)                  # time-reversed feed

    tb = T - 1 - t
    # pack_padded_sequence semantics: freeze state once past each length.
    hf_new = jnp.where(lens > t, cell(gi_f, hf, whf_ref, bhnf_ref), hf)
    hb_new = jnp.where(lens > tb, cell(gi_b, hb, whb_ref, bhnb_ref), hb)
    hid_ref[:, :Hp] = hf_new
    hid_ref[:, Hp:] = hb_new

    @pl.when(t == T - 1)
    def _():
        # relu(cat(h_fwd, h_bwd)) @ W_fc + b_fc from the loop-carried values
        # (no read-back of hid_ref).
        feat = jnp.maximum(jnp.concatenate([hf_new, hb_new], axis=1), 0.0)
        out_ref[...] = (jnp.dot(feat, wfc_ref[...],
                                preferred_element_type=jnp.float32)
                        + bfc_ref[...])


def elmo_gru_forward(x, lengths, h0, params, out_dim):
    """x: (T, B, E) f32 (time-major = embeded.permute(1,0,2));
       lengths: (B,) int; h0: (2, B, H) f32.
       Returns (logits (B, out_dim), hidden (2, B, H))."""
    T, B, E = x.shape
    H = h0.shape[-1]
    wx6 = params["wx6"]
    Ep = wx6.shape[0]
    Hp = wx6.shape[1] // 6
    OUTp = params["wfc"].shape[-1]

    # Pad batch to 8 sublanes; padded rows have length 0 and h0 = 0, so they
    # stay frozen and are sliced off afterwards.  E padded to Ep lanes.
    Bp = max(8, _round_up(B, 8))
    x_p = jnp.pad(x.astype(jnp.float32),
                  ((0, 0), (0, Bp - B), (0, Ep - E)))
    lens = jnp.pad(jnp.asarray(lengths, jnp.int32), (0, Bp - B)).reshape(Bp, 1)
    h0f = jnp.pad(h0[0], ((0, Bp - B), (0, Hp - H)))
    h0b = jnp.pad(h0[1], ((0, Bp - B), (0, Hp - H)))

    bf16, f32 = 2, 4
    est1 = (Ep * 6 * Hp * bf16 + 6 * Hp * f32            # wx6, bi6 resident
            + 2 * Bp * Ep * f32                          # x block (dbl-buf)
            + 2 * 2 * Bp * 3 * Hp * bf16)                # gi out blocks
    est2 = (2 * Hp * 3 * Hp * f32 + 2 * Hp * OUTp * f32  # whf/whb, wfc
            + (6 * Hp + OUTp + 2 * Hp) * f32             # biases
            + 2 * Bp * Hp * f32 + Bp * f32               # h0, lens
            + Bp * (OUTp + 2 * Hp) * f32                 # resident outputs
            + 2 * 2 * Bp * 3 * Hp * bf16)                # gif/gib blocks

    # ---- Stage 1: projection, pipelined over T, gi lands in HBM (bf16). ----
    gif, gib = pl.pallas_call(
        elmo_proj_kernel,
        out_shape=(jax.ShapeDtypeStruct((T, Bp, 3 * Hp), jnp.bfloat16),
                   jax.ShapeDtypeStruct((T, Bp, 3 * Hp), jnp.bfloat16)),
        grid_spec=pltpu.PrefetchScalarGridSpec(
            num_scalar_prefetch=0, grid=(T,),
            in_specs=[pl.BlockSpec((1, Bp, Ep), lambda t: (t, 0, 0)),
                      pl.BlockSpec((Ep, 6 * Hp), lambda t: (0, 0)),
                      pl.BlockSpec((1, 6 * Hp), lambda t: (0, 0))],
            out_specs=[pl.BlockSpec((1, Bp, 3 * Hp), lambda t: (t, 0, 0)),
                       pl.BlockSpec((1, Bp, 3 * Hp),
                                    lambda t: (T - 1 - t, 0, 0))]),
        compiler_params=pltpu.CompilerParams(
            dimension_semantics=("parallel",),
            vmem_limit_bytes=_vmem_limit(est1)),
    )(x_p, wx6, params["bi6"])

    # ---- Stage 2: recurrence streams gi blocks; time loop == grid. ----
    logits, hid = pl.pallas_call(
        elmo_rec_kernel,
        out_shape=(jax.ShapeDtypeStruct((Bp, OUTp), jnp.float32),
                   jax.ShapeDtypeStruct((Bp, 2 * Hp), jnp.float32)),
        grid_spec=pltpu.PrefetchScalarGridSpec(
            num_scalar_prefetch=0, grid=(T,),
            in_specs=[pl.BlockSpec((Bp, 1), lambda t: (0, 0)),
                      pl.BlockSpec((1, Bp, 3 * Hp), lambda t: (t, 0, 0)),
                      pl.BlockSpec((1, Bp, 3 * Hp), lambda t: (t, 0, 0)),
                      pl.BlockSpec((Bp, Hp), lambda t: (0, 0)),
                      pl.BlockSpec((Bp, Hp), lambda t: (0, 0)),
                      pl.BlockSpec((Hp, 3 * Hp), lambda t: (0, 0)),
                      pl.BlockSpec((Hp, 3 * Hp), lambda t: (0, 0)),
                      pl.BlockSpec((1, Hp), lambda t: (0, 0)),
                      pl.BlockSpec((1, Hp), lambda t: (0, 0)),
                      pl.BlockSpec((2 * Hp, OUTp), lambda t: (0, 0)),
                      pl.BlockSpec((1, OUTp), lambda t: (0, 0))],
            out_specs=[pl.BlockSpec((Bp, OUTp), lambda t: (0, 0)),
                       pl.BlockSpec((Bp, 2 * Hp), lambda t: (0, 0))]),
        compiler_params=pltpu.CompilerParams(
            dimension_semantics=("arbitrary",),
            vmem_limit_bytes=_vmem_limit(est2)),
    )(lens, gif, gib, h0f, h0b,
      params["whf"], params["whb"], params["bhnf"], params["bhnb"],
      params["wfc"], params["bfc"])

    hidden = jnp.stack([hid[:B, :H], hid[:B, Hp:Hp + H]], axis=0)  # (2, B, H)
    return logits[:B, :out_dim], hidden


# ---------------------------------------------------------------------------
# Parameter construction (PyTorch layout -> padded, packed kernel layout).
# ---------------------------------------------------------------------------
def make_params(key, E, H, OUT):
    ks = jax.random.split(key, 10)
    kg = 1.0 / jnp.sqrt(H)
    kf = 1.0 / jnp.sqrt(2.0 * H)
    u = lambda k, shape, s: jax.random.uniform(k, shape, jnp.float32, -s, s)

    pt = {
        "w_ih_f": u(ks[0], (3 * H, E), kg), "w_hh_f": u(ks[1], (3 * H, H), kg),
        "b_ih_f": u(ks[2], (3 * H,), kg),   "b_hh_f": u(ks[3], (3 * H,), kg),
        "w_ih_b": u(ks[4], (3 * H, E), kg), "w_hh_b": u(ks[5], (3 * H, H), kg),
        "b_ih_b": u(ks[6], (3 * H,), kg),   "b_hh_b": u(ks[7], (3 * H,), kg),
        "fc_w": u(ks[8], (OUT, 2 * H), kf), "fc_b": u(ks[9], (OUT,), kf),
    }

    Ep = _round_up(E, 128)
    Hp = _round_up(H, 128)
    OUTp = _round_up(OUT, 128)

    def pad_gate_cols(w):
        # (rows, 3H) -> (rows, 3Hp): each r/z/n block starts on a 128 lane
        # boundary (lane-aligned gate slices inside the kernel).
        r, z, n = w[:, :H], w[:, H:2 * H], w[:, 2 * H:]
        pad = ((0, 0), (0, Hp - H))
        return jnp.concatenate(
            [jnp.pad(r, pad), jnp.pad(z, pad), jnp.pad(n, pad)], axis=1)

    def pack_dir(w_ih, w_hh, b_ih, b_hh):
        wx = pad_gate_cols(jnp.pad(w_ih.T, ((0, Ep - E), (0, 0))))   # (Ep,3Hp)
        wh = pad_gate_cols(jnp.pad(w_hh.T, ((0, Hp - H), (0, 0))))   # (Hp,3Hp)
        # r/z: combined b_ih + b_hh; n: input-side bias only (all folded into
        # the hoisted projection). Hidden-side n bias kept separate.
        bi = pad_gate_cols(jnp.concatenate(
            [b_ih[:2 * H] + b_hh[:2 * H], b_ih[2 * H:]])[None, :])   # (1,3Hp)
        bhn = jnp.pad(b_hh[2 * H:][None, :], ((0, 0), (0, Hp - H)))  # (1,Hp)
        return wx, wh, bi, bhn

    wxf, whf, bif, bhnf = pack_dir(pt["w_ih_f"], pt["w_hh_f"],
                                   pt["b_ih_f"], pt["b_hh_f"])
    wxb, whb, bib, bhnb = pack_dir(pt["w_ih_b"], pt["w_hh_b"],
                                   pt["b_ih_b"], pt["b_hh_b"])

    wx6 = jnp.concatenate([wxf, wxb], axis=1).astype(jnp.bfloat16)   # (Ep,6Hp)
    bi6 = jnp.concatenate([bif, bib], axis=1)                        # (1,6Hp)

    wfc = pt["fc_w"].T                                               # (2H,OUT)
    wfc_p = jnp.concatenate(
        [jnp.pad(wfc[:H], ((0, Hp - H), (0, OUTp - OUT))),
         jnp.pad(wfc[H:], ((0, Hp - H), (0, OUTp - OUT)))], axis=0)  # (2Hp,OUTp)
    bfc_p = jnp.pad(pt["fc_b"][None, :], ((0, 0), (0, OUTp - OUT)))  # (1,OUTp)

    kernel_params = {
        "wx6": wx6, "bi6": bi6,
        "whf": whf, "whb": whb, "bhnf": bhnf, "bhnb": bhnb,
        "wfc": wfc_p, "bfc": bfc_p,
    }
    return kernel_params, pt


# Pure-JAX f32 reference (mirrors PyTorch packed bi-GRU + relu(cat) + fc).
def ref_forward(x, lengths, h0, pt, H):
    T = x.shape[0]

    def cell(xt, h, w_ih, w_hh, b_ih, b_hh):
        gi = xt @ w_ih.T + b_ih
        gh = h @ w_hh.T + b_hh
        r = jax.nn.sigmoid(gi[:, :H] + gh[:, :H])
        z = jax.nn.sigmoid(gi[:, H:2 * H] + gh[:, H:2 * H])
        n = jnp.tanh(gi[:, 2 * H:] + r * gh[:, 2 * H:])
        return (1.0 - z) * n + z * h

    hf, hb = h0[0], h0[1]
    for t in range(T):
        m = (lengths > t).astype(jnp.float32)[:, None]
        hf = m * cell(x[t], hf, pt["w_ih_f"], pt["w_hh_f"],
                      pt["b_ih_f"], pt["b_hh_f"]) + (1.0 - m) * hf
    for t in range(T - 1, -1, -1):
        m = (lengths > t).astype(jnp.float32)[:, None]
        hb = m * cell(x[t], hb, pt["w_ih_b"], pt["w_hh_b"],
                      pt["b_ih_b"], pt["b_hh_b"]) + (1.0 - m) * hb
    feat = jnp.maximum(jnp.concatenate([hf, hb], axis=1), 0.0)
    logits = feat @ pt["fc_w"].T + pt["fc_b"]
    return logits, jnp.stack([hf, hb], axis=0)


if __name__ == "__main__":
    B, T, E, H, OUT = 4, 10, 64, 32, 20
    key = jax.random.PRNGKey(0)
    k_x, k_h, k_p = jax.random.split(key, 3)

    # x stands in for the ELMo representation after permute(1,0,2): (T, B, E).
    # TODO(synk): the ELMo character embedder itself (external pretrained
    # files) is not reproduced; its output is synthesized here.
    x = jax.random.normal(k_x, (T, B, E), dtype=jnp.float32)
    lengths = jnp.array([10, 7, 5, 3], dtype=jnp.int32)   # descending (pack_padded)
    h0 = 0.1 * jax.random.normal(k_h, (2, B, H), dtype=jnp.float32)

    params, pt = make_params(k_p, E, H, OUT)

    logits, hidden = elmo_gru_forward(x, lengths, h0, params, OUT)
    jax.block_until_ready((logits, hidden))

    ref_logits, ref_hidden = ref_forward(x, lengths, h0, pt, H)
    # bf16 input projection / gi storage -> loosened tolerances vs f32 ref.
    assert jnp.allclose(logits, ref_logits, atol=5e-2, rtol=5e-2)
    assert jnp.allclose(hidden, ref_hidden, atol=5e-2, rtol=5e-2)
    print("KERNEL_OK")
</pallas_src>

<mosaic_0001>
module attributes {stable_mosaic.version = 11 : i64} {
  func.func @elmo_proj_kernel(%arg0: i32, %arg1: memref<1x8x128xf32, #tpu.memory_space<vmem>>, %arg2: memref<128x768xbf16, #tpu.memory_space<vmem>>, %arg3: memref<1x768xf32, #tpu.memory_space<vmem>>, %arg4: memref<1x8x384xbf16, #tpu.memory_space<vmem>>, %arg5: memref<1x8x384xbf16, #tpu.memory_space<vmem>>) attributes {dimension_semantics = [#tpu.dimension_semantics<parallel>], iteration_bounds = array<i64: 10>, scalar_prefetch = 0 : i64, scratch_operands = 0 : i64, tpu.core_type = #tpu.core_type<tc>, window_params = [{transform_indices = @transform_0, window_bounds = array<i64: 1, 8, 128>}, {pipeline_mode = #tpu.pipeline_mode<synchronous>, transform_indices = @transform_1, window_bounds = array<i64: 128, 768>}, {pipeline_mode = #tpu.pipeline_mode<synchronous>, transform_indices = @transform_2, window_bounds = array<i64: 1, 768>}, {transform_indices = @transform_3, window_bounds = array<i64: 1, 8, 384>}, {transform_indices = @transform_4, window_bounds = array<i64: 1, 8, 384>}]} {
    %c0 = arith.constant 0 : index
    %c0_0 = arith.constant 0 : index
    %c0_1 = arith.constant 0 : index
    %0 = vector.load %arg1[%c0, %c0_0, %c0_1] : memref<1x8x128xf32, #tpu.memory_space<vmem>>, vector<1x8x128xf32>
    %1 = vector.shape_cast %0 : vector<1x8x128xf32> to vector<8x128xf32>
    %2 = arith.truncf %1 : vector<8x128xf32> to vector<8x128xbf16>
    %c0_2 = arith.constant 0 : index
    %c0_3 = arith.constant 0 : index
    %3 = vector.load %arg2[%c0_2, %c0_3] : memref<128x768xbf16, #tpu.memory_space<vmem>>, vector<128x768xbf16>
    %cst = arith.constant dense<0.000000e+00> : vector<8x768xf32>
    %4 = tpu.matmul %2, %3, %cst {dimension_numbers = #tpu.dot_dimension_numbers<[1], [0], [0], [1], [0, 0, 1, 1], [], []>} : vector<8x128xbf16>, vector<128x768xbf16>, vector<8x768xf32> -> vector<8x768xf32>
    %c0_4 = arith.constant 0 : index
    %c0_5 = arith.constant 0 : index
    %5 = vector.load %arg3[%c0_4, %c0_5] : memref<1x768xf32, #tpu.memory_space<vmem>>, vector<1x768xf32>
    %6 = vector.broadcast %5 : vector<1x768xf32> to vector<8x768xf32>
    %7 = arith.addf %4, %6 : vector<8x768xf32>
    %8 = arith.truncf %7 : vector<8x768xf32> to vector<8x768xbf16>
    %9 = vector.extract_strided_slice %8 {offsets = [0, 0], sizes = [8, 384], strides = [1, 1]} : vector<8x768xbf16> to vector<8x384xbf16>
    %c0_6 = arith.constant 0 : index
    %c0_7 = arith.constant 0 : index
    %c0_8 = arith.constant 0 : index
    %10 = vector.load %arg4[%c0_6, %c0_7, %c0_8] : memref<1x8x384xbf16, #tpu.memory_space<vmem>>, vector<1x8x384xbf16>
    %11 = vector.shape_cast %10 : vector<1x8x384xbf16> to vector<8x384xbf16>
    %12 = vector.shape_cast %9 : vector<8x384xbf16> to vector<1x8x384xbf16>
    tpu.vector_store %arg4[%c0_6, %c0_7, %c0_8], %12 {strides = array<i32>} : memref<1x8x384xbf16, #tpu.memory_space<vmem>>, vector<1x8x384xbf16>,
    %13 = vector.extract_strided_slice %8 {offsets = [0, 384], sizes = [8, 384], strides = [1, 1]} : vector<8x768xbf16> to vector<8x384xbf16>
    %c0_9 = arith.constant 0 : index
    %c0_10 = arith.constant 0 : index
    %c0_11 = arith.constant 0 : index
    %14 = vector.load %arg5[%c0_9, %c0_10, %c0_11] : memref<1x8x384xbf16, #tpu.memory_space<vmem>>, vector<1x8x384xbf16>
    %15 = vector.shape_cast %14 : vector<1x8x384xbf16> to vector<8x384xbf16>
    %16 = vector.shape_cast %13 : vector<8x384xbf16> to vector<1x8x384xbf16>
    tpu.vector_store %arg5[%c0_9, %c0_10, %c0_11], %16 {strides = array<i32>} : memref<1x8x384xbf16, #tpu.memory_space<vmem>>, vector<1x8x384xbf16>,
    return
  }
  func.func @transform_0(%arg0: i32) -> (i32, i32, i32) {
    %c0_i32 = arith.constant 0 : i32
    %c0_i32_0 = arith.constant 0 : i32
    %c0_i32_1 = arith.constant 0 : i32
    return %arg0, %c0_i32, %c0_i32_0 : i32, i32, i32
  }
  func.func @transform_1(%arg0: i32) -> (i32, i32) {
    %c0_i32 = arith.constant 0 : i32
    %c0_i32_0 = arith.constant 0 : i32
    %c0_i32_1 = arith.constant 0 : i32
    return %c0_i32, %c0_i32_0 : i32, i32
  }
  func.func @transform_2(%arg0: i32) -> (i32, i32) {
    %c0_i32 = arith.constant 0 : i32
    %c0_i32_0 = arith.constant 0 : i32
    %c0_i32_1 = arith.constant 0 : i32
    return %c0_i32, %c0_i32_0 : i32, i32
  }
  func.func @transform_3(%arg0: i32) -> (i32, i32, i32) {
    %c0_i32 = arith.constant 0 : i32
    %c0_i32_0 = arith.constant 0 : i32
    %c0_i32_1 = arith.constant 0 : i32
    return %arg0, %c0_i32, %c0_i32_0 : i32, i32, i32
  }
  func.func @transform_4(%arg0: i32) -> (i32, i32, i32) {
    %c9_i32 = arith.constant 9 : i32
    %0 = arith.subi %c9_i32, %arg0 : i32
    %c0_i32 = arith.constant 0 : i32
    %c0_i32_0 = arith.constant 0 : i32
    %c0_i32_1 = arith.constant 0 : i32
    return %0, %c0_i32, %c0_i32_0 : i32, i32, i32
  }
}

</mosaic_0001>

<llo_original>
// kernel: tpu_custom_call.1
$region0: #{tpu_custom_call.1}
  #allocation0 [shape = 'u32[]', space=smem, size = 0x4, offset = 0x4, fixed_abs, tag = 'smem constant byte address 0x4 - core index']
  #allocation1 [shape = 'u32[144,128]{1,0:T(1,128)}', space=vmem, size = 0x12000, scoped, tag = 'internal scratch']
  %s0 = inlined_call_operand.hbm [shape: f32[10,8,128], index: 0, kind: input, shape index: {}]
  %s1 = inlined_call_operand.hbm [shape: bf16[128,768], index: 1, kind: input, shape index: {}]
  %s2 = inlined_call_operand.vmem [shape: f32[1,768], index: 2, kind: input, shape index: {}]
  %s3 = inlined_call_operand.hbm [shape: bf16[10,8,384], index: 3, kind: output, shape index: {0}]
  %s4 = inlined_call_operand.hbm [shape: bf16[10,8,384], index: 4, kind: output, shape index: {1}]
  %5 = xla_tuple %s3, %s4
  %s6 = sld [smem:[#allocation0]]
  $region61: #{tpu_custom_call.1} parent=0
    _
  %s8 = ssub.s32 1, %s6
  %s9 = scalar_select 0, %s8, %s6
  $region1: #{tpu_custom_call.1} parent=0
    #allocation2 [shape = 'u8[8192]{0}', space=vmem, size = 0x2000, scoped, tag = 'input window, operand 0']
    #allocation3 [shape = 's32[2]{0}', space=sflag, size = 0x8, scoped, tag = 'scoped memory for tpu_custom_call.1']
    #allocation4 [shape = 's32[2]{0}', space=sflag, size = 0x8, scoped, tag = 'scoped memory for tpu_custom_call.1']
    #allocation5 [shape = 'u8[196608]{0}', space=vmem, size = 0x30000, scoped, tag = 'input window, operand 1, single buffered']
    #allocation6 [shape = 's32[1]{0}', space=sflag, size = 0x4, scoped, tag = 'scoped memory for tpu_custom_call.1']
    #allocation7 [shape = 'u8[12288]{0}', space=vmem, size = 0x3000, scoped, tag = 'output window, operand 0']
    #allocation8 [shape = 'u8[12288]{0}', space=vmem, size = 0x3000, scoped, tag = 'output window, operand 1']
    #allocation9 [shape = 's32[2]{0}', space=sflag, size = 0x8, scoped, tag = 'scoped memory for tpu_custom_call.1']
    %10 = vsyncpa [#allocation3], 0
    %s11 = scalar_lea.sflag [#allocation3], 1
    %12 = vsyncpa %s11, 0
    %13 = vsyncpa [#allocation6], 0
    %14 = vsyncpa [#allocation4], 0
    %s15 = scalar_lea.sflag [#allocation4], 1
    %16 = vsyncpa %s15, 0
    %17 = vsyncpa [#allocation9], 0
    %s18 = scalar_lea.sflag [#allocation9], 1
    %19 = vsyncpa %s18, 0
    loop: start=0, step=1, limit=12
    $region2: #{tpu_custom_call.1} parent=1 // loop_pre_header
      _
    $region3: #{tpu_custom_call.1} parent=1 // loop_header
      %s21 = sphi 0, %s25
      %p22 = scmp.ge.s32.totalorder %s21, 12
      %s31 = sphi 0, %s33
      %s34 = sphi 0, %s31
      %s35 = sphi 0, %s34
      %s51 = sphi 0, %s35
      %s55 = sphi 0, %s55
      %s57 = sphi 0, %s55
      %s58 = sphi 0, %s57
      %s72 = sphi 0, %s58
      %s76 = sphi 0, %s76
      %s78 = sphi 0, %s76
      %s79 = sphi 0, %s78
      %s93 = sphi 0, %s79
      %s99 = sphi 0, %s101
      %s102 = sphi 0, %s99
      %s103 = sphi 0, %s102
      %s119 = sphi 0, %s103
      %s127 = sphi 0, %s129
      %s130 = sphi 0, %s127
      %s131 = sphi 0, %s130
      %s147 = sphi 0, %s131
    $region4: #{tpu_custom_call.1} parent=1 // loop_header_branch
      %24 = sbr.rel (%p22) target = $region8
    $region5: #{tpu_custom_call.1} parent=1 // loop_body
      %s26 = ssub.s32 %s21, 1
      %s27 = ssub.s32 %s21, 2
      %s28 = sadd.s32 %s21, 1
      %s29 = ssub.s32 %s21, %s28
      %p30 = scmp.eq.s32.totalorder %s29, 0
      %s32 = sadd.s32 %s31, 1
      %s33 = scalar_select %p30, %s31, %s32
      %p36 = pneg %p30
      %p37 = scmp.eq.s32.totalorder %s21, 9
      %p38 = por %p36, %p37
      %p39 = scmp.ne.s32.totalorder %s31, %s34
      %p40 = scmp.eq.s32.totalorder %s21, 0
      %p41 = por %p39, %p40
      %p42 = scmp.ne.s32.totalorder %s31, %s34
      %p43 = scmp.eq.s32.totalorder %s26, 9
      %p44 = por %p42, %p43
      %p45 = scmp.ne.s32.totalorder %s34, %s35
      %p46 = scmp.eq.s32.totalorder %s26, 0
      %p47 = por %p45, %p46
      %p48 = scmp.ne.s32.totalorder %s34, %s35
      %p49 = scmp.eq.s32.totalorder %s27, 9
      %p50 = por %p48, %p49
      %p52 = scmp.ne.s32.totalorder %s35, %s51
      %p53 = scmp.eq.s32.totalorder %s27, 0
      %p54 = por %p52, %p53
      %s56 = sadd.s32 %s55, 1
      %p59 = scmp.eq.s32.totalorder %s21, 9
      %p60 = scmp.ne.s32.totalorder %s55, %s57
      %p61 = scmp.eq.s32.totalorder %s21, 0
      %p62 = por %p60, %p61
      %p63 = scmp.ne.s32.totalorder %s55, %s57
      %p64 = scmp.eq.s32.totalorder %s26, 9
      %p65 = por %p63, %p64
      %p66 = scmp.ne.s32.totalorder %s57, %s58
      %p67 = scmp.eq.s32.totalorder %s26, 0
      %p68 = por %p66, %p67
      %p69 = scmp.ne.s32.totalorder %s57, %s58
      %p70 = scmp.eq.s32.totalorder %s27, 9
      %p71 = por %p69, %p70
      %p73 = scmp.ne.s32.totalorder %s58, %s72
      %p74 = scmp.eq.s32.totalorder %s27, 0
      %p75 = por %p73, %p74
      %s77 = sadd.s32 %s76, 1
      %p80 = scmp.eq.s32.totalorder %s21, 9
      %p81 = scmp.ne.s32.totalorder %s76, %s78
      %p82 = scmp.eq.s32.totalorder %s21, 0
      %p83 = por %p81, %p82
      %p84 = scmp.ne.s32.totalorder %s76, %s78
      %p85 = scmp.eq.s32.totalorder %s26, 9
      %p86 = por %p84, %p85
      %p87 = scmp.ne.s32.totalorder %s78, %s79
      %p88 = scmp.eq.s32.totalorder %s26, 0
      %p89 = por %p87, %p88
      %p90 = scmp.ne.s32.totalorder %s78, %s79
      %p91 = scmp.eq.s32.totalorder %s27, 9
      %p92 = por %p90, %p91
      %p94 = scmp.ne.s32.totalorder %s79, %s93
      %p95 = scmp.eq.s32.totalorder %s27, 0
      %p96 = por %p94, %p95
      %s97 = ssub.s32 %s21, %s28
      %p98 = scmp.eq.s32.totalorder %s97, 0
      %s100 = sadd.s32 %s99, 1
      %s101 = scalar_select %p98, %s99, %s100
      %p104 = pneg %p98
      %p105 = scmp.eq.s32.totalorder %s21, 9
      %p106 = por %p104, %p105
      %p107 = scmp.ne.s32.totalorder %s99, %s102
      %p108 = scmp.eq.s32.totalorder %s21, 0
      %p109 = por %p107, %p108
      %p110 = scmp.ne.s32.totalorder %s99, %s102
      %p111 = scmp.eq.s32.totalorder %s26, 9
      %p112 = por %p110, %p111
      %p113 = scmp.ne.s32.totalorder %s102, %s103
      %p114 = scmp.eq.s32.totalorder %s26, 0
      %p115 = por %p113, %p114
      %p116 = scmp.ne.s32.totalorder %s102, %s103
      %p117 = scmp.eq.s32.totalorder %s27, 9
      %p118 = por %p116, %p117
      %p120 = scmp.ne.s32.totalorder %s103, %s119
      %p121 = scmp.eq.s32.totalorder %s27, 0
      %p122 = por %p120, %p121
      %s123 = ssub.s32 9, %s21
      %s124 = ssub.s32 9, %s28
      %s125 = ssub.s32 %s123, %s124
      %p126 = scmp.eq.s32.totalorder %s125, 0
      %s128 = sadd.s32 %s127, 1
      %s129 = scalar_select %p126, %s127, %s128
      %p132 = pneg %p126
      %p133 = scmp.eq.s32.totalorder %s21, 9
      %p134 = por %p132, %p133
      %p135 = scmp.ne.s32.totalorder %s127, %s130
      %p136 = scmp.eq.s32.totalorder %s21, 0
      %p137 = por %p135, %p136
      %p138 = scmp.ne.s32.totalorder %s127, %s130
      %p139 = scmp.eq.s32.totalorder %s26, 9
      %p140 = por %p138, %p139
      %p141 = scmp.ne.s32.totalorder %s130, %s131
      %p142 = scmp.eq.s32.totalorder %s26, 0
      %p143 = por %p141, %p142
      %p144 = scmp.ne.s32.totalorder %s130, %s131
      %p145 = scmp.eq.s32.totalorder %s27, 9
      %p146 = por %p144, %p145
      %p148 = scmp.ne.s32.totalorder %s131, %s147
      %p149 = scmp.eq.s32.totalorder %s27, 0
      %p150 = por %p148, %p149
      %p151 = scmp.le.s32.totalorder 1, %s21
      %p152 = scmp.lt.s32.totalorder %s21, 11
      %p153 = pnand %p151, %p152
      %p154 = pneg %p153
      // Predicated region
      $region9: #{tpu_custom_call.1} parent=5 // pred_check
        _
      $region10: #{tpu_custom_call.1} parent=5 // pred_check_branch
        %156 = sbr.rel (%p153) target = $region12
      $region11: #{tpu_custom_call.1} parent=5 // pred_region
        %s157 = ssub.s32 %s21, 1
        // Predicated region
        $region13: #{tpu_custom_call.1} parent=11 // pred_check
          %p158 = pneg %p68
        $region14: #{tpu_custom_call.1} parent=11 // pred_check_branch
          %160 = sbr.rel (%p158) target = $region16
        $region15: #{tpu_custom_call.1} parent=11 // pred_region
          %s162 = ssub.s32 6144, 6144
          %163 = vsyncadd [#allocation6], %s162
          %s164 = sshll.u32 [#allocation5], 4
          %s165 = int_to_ptr.vmem [resolvable:$true] %s164
          %170 = dma.hbm_to_vmem [thread:$0]  %s1, 6144, %s165, [#allocation6], 384, 384, 24
        $region16: #{tpu_custom_call.1} parent=11 // pred_fallthru
          _
        // Predicated region
        $region17: #{tpu_custom_call.1} parent=11 // pred_check
          %p171 = pneg %p89
        $region18: #{tpu_custom_call.1} parent=11 // pred_check_branch
          %173 = sbr.rel (%p171) target = $region20
        $region19: #{tpu_custom_call.1} parent=11 // pred_region
          _
        $region20: #{tpu_custom_call.1} parent=11 // pred_fallthru
          _
      $region12: #{tpu_custom_call.1} parent=5 // pred_fallthru
        _
      %p174 = scmp.lt.s32.totalorder %s21, 10
      // Predicated region
      $region21: #{tpu_custom_call.1} parent=5 // pred_check
        %p175 = pneg %p174
      $region22: #{tpu_custom_call.1} parent=5 // pred_check_branch
        %177 = sbr.rel (%p175) target = $region24
      $region23: #{tpu_custom_call.1} parent=5 // pred_region
        // Predicated region
        $region25: #{tpu_custom_call.1} parent=23 // pred_check
          %p178 = pneg %p41
        $region26: #{tpu_custom_call.1} parent=23 // pred_check_branch
          %180 = sbr.rel (%p178) target = $region28
        $region27: #{tpu_custom_call.1} parent=23 // pred_region
          %s181 = sand.u32 %s31, 1
          %s182 = scalar_lea.sflag [#allocation3], %s181
          %s183 = sand.u32 %s31, 1
          %s184 = smul.addr %s183, 8
          %s185 = scalar_lea.vmem [#allocation2], %s184
          %s187 = ssub.s32 128, 128
          %188 = vsyncadd %s182, %s187
          %s189 = smul.addr %s21, 128
          %s190 = scalar_lea.hbm %s0, %s189
          %s192 = sshll.u32 %s185, 4
          %s193 = int_to_ptr.vmem [resolvable:$true] %s192
          %195 = dma.hbm_to_vmem [thread:$0]  %s190, 128, %s193, %s182
        $region28: #{tpu_custom_call.1} parent=23 // pred_fallthru
          _
      $region24: #{tpu_custom_call.1} parent=5 // pred_fallthru
        _
      %p196 = scmp.le.s32.totalorder 1, %s21
      %p197 = scmp.lt.s32.totalorder %s21, 11
      %p198 = pnand %p196, %p197
      %p199 = pneg %p198
      // Predicated region
      $region29: #{tpu_custom_call.1} parent=5 // pred_check
        _
      $region30: #{tpu_custom_call.1} parent=5 // pred_check_branch
        %201 = sbr.rel (%p198) target = $region32
      $region31: #{tpu_custom_call.1} parent=5 // pred_region
        %s202 = ssub.s32 %s21, 1
        %s203 = sand.u32 %s34, 1
        %s204 = scalar_lea.sflag [#allocation3], %s203
        %s205 = sand.u32 %s34, 1
        %s206 = smul.addr %s205, 8
        %s207 = scalar_lea.vmem [#allocation2], %s206
        // Predicated region
        $region33: #{tpu_custom_call.1} parent=31 // pred_check
          %p208 = pneg %p47
        $region34: #{tpu_custom_call.1} parent=31 // pred_check_branch
          %210 = sbr.rel (%p208) target = $region36
        $region35: #{tpu_custom_call.1} parent=31 // pred_region
          %211 = dma.done %s204, 128
        $region36: #{tpu_custom_call.1} parent=31 // pred_fallthru
          _
        // Predicated region
        $region37: #{tpu_custom_call.1} parent=31 // pred_check
          %p212 = pneg %p68
        $region38: #{tpu_custom_call.1} parent=31 // pred_check_branch
          %214 = sbr.rel (%p212) target = $region40
        $region39: #{tpu_custom_call.1} parent=31 // pred_region
          %215 = dma.done [#allocation6], 6144
        $region40: #{tpu_custom_call.1} parent=31 // pred_fallthru
          _
        %s216 = sand.u32 %s34, 1
        %s217 = scalar_lea.sflag [#allocation3], %s216
        %s218 = sand.u32 %s34, 1
        %s219 = smul.addr %s218, 8
        %s220 = scalar_lea.vmem [#allocation2], %s219
        %p221 = pneg %p47
        %p222 = pneg %p44
        %p223 = pneg %p68
        %p224 = pneg %p65
        %p225 = pneg %p89
        %p226 = pneg %p86
        %p227 = pneg %p115
        %p228 = pneg %p112
        %s229 = sand.u32 %s102, 1
        %s230 = scalar_lea.sflag [#allocation4], %s229
        %s231 = sand.u32 %s102, 1
        %s232 = smul.addr %s231, 12
        %s233 = scalar_lea.vmem [#allocation7], %s232
        %p234 = pneg %p143
        %p235 = pneg %p140
        %s236 = sand.u32 %s130, 1
        %s237 = scalar_lea.sflag [#allocation9], %s236
        %s238 = sand.u32 %s130, 1
        %s239 = smul.addr %s238, 12
        %s240 = scalar_lea.vmem [#allocation8], %s239
        %s241 = ssub.s32 9, %s26
        %v243 = vld [vmem:[%s207] sm:$0xff]
        %v244 = vpack.c.bf16 %v243, %v243
        %v245 = vld [vmem:[#allocation5] sm:$0xff]
        %v246 = vld [vmem:[#allocation5 + $0x8] sm:$0xff]
        %v247 = vld [vmem:[#allocation5 + $0x10] sm:$0xff]
        %v248 = vld [vmem:[#allocation5 + $0x18] sm:$0xff]
        %v249 = vld [vmem:[#allocation5 + $0x20] sm:$0xff]
        %v250 = vld [vmem:[#allocation5 + $0x28] sm:$0xff]
        %v251 = vld [vmem:[#allocation5 + $0x30] sm:$0xff]
        %v252 = vld [vmem:[#allocation5 + $0x38] sm:$0xff]
        %v253 = vld [vmem:[#allocation5 + $0x40] sm:$0xff]
        %v254 = vld [vmem:[#allocation5 + $0x48] sm:$0xff]
        %v255 = vld [vmem:[#allocation5 + $0x50] sm:$0xff]
        %v256 = vld [vmem:[#allocation5 + $0x58] sm:$0xff]
        %v257 = vld [vmem:[#allocation5 + $0x60] sm:$0xff]
        %v258 = vld [vmem:[#allocation5 + $0x68] sm:$0xff]
        %v259 = vld [vmem:[#allocation5 + $0x70] sm:$0xff]
        %v260 = vld [vmem:[#allocation5 + $0x78] sm:$0xff]
        %v261 = vld [vmem:[#allocation5 + $0x80] sm:$0xff]
        %v262 = vld [vmem:[#allocation5 + $0x88] sm:$0xff]
        %v263 = vld [vmem:[#allocation5 + $0x90] sm:$0xff]
        %v264 = vld [vmem:[#allocation5 + $0x98] sm:$0xff]
        %v265 = vld [vmem:[#allocation5 + $0xa0] sm:$0xff]
        %v266 = vld [vmem:[#allocation5 + $0xa8] sm:$0xff]
        %v267 = vld [vmem:[#allocation5 + $0xb0] sm:$0xff]
        %v268 = vld [vmem:[#allocation5 + $0xb8] sm:$0xff]
        %v269 = vld [vmem:[#allocation5 + $0xc0] sm:$0xff]
        %v270 = vld [vmem:[#allocation5 + $0xc8] sm:$0xff]
        %v271 = vld [vmem:[#allocation5 + $0xd0] sm:$0xff]
        %v272 = vld [vmem:[#allocation5 + $0xd8] sm:$0xff]
        %v273 = vld [vmem:[#allocation5 + $0xe0] sm:$0xff]
        %v274 = vld [vmem:[#allocation5 + $0xe8] sm:$0xff]
        %v275 = vld [vmem:[#allocation5 + $0xf0] sm:$0xff]
        %v276 = vld [vmem:[#allocation5 + $0xf8] sm:$0xff]
        %v277 = vld [vmem:[#allocation5 + $0x100] sm:$0xff]
        %v278 = vld [vmem:[#allocation5 + $0x108] sm:$0xff]
        %v279 = vld [vmem:[#allocation5 + $0x110] sm:$0xff]
        %v280 = vld [vmem:[#allocation5 + $0x118] sm:$0xff]
        %v281 = vld [vmem:[#allocation5 + $0x120] sm:$0xff]
        %v282 = vld [vmem:[#allocation5 + $0x128] sm:$0xff]
        %v283 = vld [vmem:[#allocation5 + $0x130] sm:$0xff]
        %v284 = vld [vmem:[#allocation5 + $0x138] sm:$0xff]
        %v285 = vld [vmem:[#allocation5 + $0x140] sm:$0xff]
        %v286 = vld [vmem:[#allocation5 + $0x148] sm:$0xff]
        %v287 = vld [vmem:[#allocation5 + $0x150] sm:$0xff]
        %v288 = vld [vmem:[#allocation5 + $0x158] sm:$0xff]
        %v289 = vld [vmem:[#allocation5 + $0x160] sm:$0xff]
        %v290 = vld [vmem:[#allocation5 + $0x168] sm:$0xff]
        %v291 = vld [vmem:[#allocation5 + $0x170] sm:$0xff]
        %v292 = vld [vmem:[#allocation5 + $0x178] sm:$0xff]
        %v293 = vld [vmem:[%s2] sm:$0x3f]
        %v295 = vlaneseq
        %v296 = vshrl.u32 %v295, 7
        %v297 = vsub.s32 0, %v296
        %v298 = vrot.slane %v293, %v297
        %v299 = vlaneseq
        %v300 = vshrl.u32 %v299, 7
        %v301 = vsub.s32 1, %v300
        %v302 = vrot.slane %v293, %v301
        %v303 = vlaneseq
        %v304 = vshrl.u32 %v303, 7
        %v305 = vsub.s32 2, %v304
        %v306 = vrot.slane %v293, %v305
        %v307 = vlaneseq
        %v308 = vshrl.u32 %v307, 7
        %v309 = vsub.s32 3, %v308
        %v310 = vrot.slane %v293, %v309
        %v311 = vlaneseq
        %v312 = vshrl.u32 %v311, 7
        %v313 = vsub.s32 4, %v312
        %v314 = vrot.slane %v293, %v313
        %v315 = vlaneseq
        %v316 = vshrl.u32 %v315, 7
        %v317 = vsub.s32 5, %v316
        %v318 = vrot.slane %v293, %v317
        %v373 = vunpack.c.l.b16 %v245
        %v374 = vunpack.c.h.b16 %v245
        %v375 = vunpack.c.l.b16 %v246
        %v376 = vunpack.c.h.b16 %v246
        %v377 = vunpack.c.l.b16 %v247
        %v378 = vunpack.c.h.b16 %v247
        %v379 = vunpack.c.l.b16 %v248
        %v380 = vunpack.c.h.b16 %v248
        %v381 = vunpack.c.l.b16 %v249
        %v382 = vunpack.c.h.b16 %v249
        %v383 = vunpack.c.l.b16 %v250
        %v384 = vunpack.c.h.b16 %v250
        %v385 = vunpack.c.l.b16 %v251
        %v386 = vunpack.c.h.b16 %v251
        %v387 = vunpack.c.l.b16 %v252
        %v388 = vunpack.c.h.b16 %v252
        %v389 = vunpack.c.l.b16 %v253
        %v390 = vunpack.c.h.b16 %v253
        %v391 = vunpack.c.l.b16 %v254
        %v392 = vunpack.c.h.b16 %v254
        %v393 = vunpack.c.l.b16 %v255
        %v394 = vunpack.c.h.b16 %v255
        %v395 = vunpack.c.l.b16 %v256
        %v396 = vunpack.c.h.b16 %v256
        %v397 = vunpack.c.l.b16 %v257
        %v398 = vunpack.c.h.b16 %v257
        %v399 = vunpack.c.l.b16 %v258
        %v400 = vunpack.c.h.b16 %v258
        %v401 = vunpack.c.l.b16 %v259
        %v402 = vunpack.c.h.b16 %v259
        %v403 = vunpack.c.l.b16 %v260
        %v404 = vunpack.c.h.b16 %v260
        %v405 = vunpack.c.l.b16 %v261
        %v406 = vunpack.c.h.b16 %v261
        %v407 = vunpack.c.l.b16 %v262
        %v408 = vunpack.c.h.b16 %v262
        %v409 = vunpack.c.l.b16 %v263
        %v410 = vunpack.c.h.b16 %v263
        %v411 = vunpack.c.l.b16 %v264
        %v412 = vunpack.c.h.b16 %v264
        %v413 = vunpack.c.l.b16 %v265
        %v414 = vunpack.c.h.b16 %v265
        %v415 = vunpack.c.l.b16 %v266
        %v416 = vunpack.c.h.b16 %v266
        %v417 = vunpack.c.l.b16 %v267
        %v418 = vunpack.c.h.b16 %v267
        %v419 = vunpack.c.l.b16 %v268
        %v420 = vunpack.c.h.b16 %v268
        %v421 = vunpack.c.l.b16 %v269
        %v422 = vunpack.c.h.b16 %v269
        %v423 = vunpack.c.l.b16 %v270
        %v424 = vunpack.c.h.b16 %v270
        %v425 = vunpack.c.l.b16 %v271
        %v426 = vunpack.c.h.b16 %v271
        %v427 = vunpack.c.l.b16 %v272
        %v428 = vunpack.c.h.b16 %v272
        %v429 = vunpack.c.l.b16 %v273
        %v430 = vunpack.c.h.b16 %v273
        %v431 = vunpack.c.l.b16 %v274
        %v432 = vunpack.c.h.b16 %v274
        %v433 = vunpack.c.l.b16 %v275
        %v434 = vunpack.c.h.b16 %v275
        %v435 = vunpack.c.l.b16 %v276
        %v436 = vunpack.c.h.b16 %v276
        %v437 = vunpack.c.l.b16 %v277
        %v438 = vunpack.c.h.b16 %v277
        %v439 = vunpack.c.l.b16 %v278
        %v440 = vunpack.c.h.b16 %v278
        %v441 = vunpack.c.l.b16 %v279
        %v442 = vunpack.c.h.b16 %v279
        %v443 = vunpack.c.l.b16 %v280
        %v444 = vunpack.c.h.b16 %v280
        %v445 = vunpack.c.l.b16 %v281
        %v446 = vunpack.c.h.b16 %v281
        %v447 = vunpack.c.l.b16 %v282
        %v448 = vunpack.c.h.b16 %v282
        %v449 = vunpack.c.l.b16 %v283
        %v450 = vunpack.c.h.b16 %v283
        %v451 = vunpack.c.l.b16 %v284
        %v452 = vunpack.c.h.b16 %v284
        %v453 = vunpack.c.l.b16 %v285
        %v454 = vunpack.c.h.b16 %v285
        %v455 = vunpack.c.l.b16 %v286
        %v456 = vunpack.c.h.b16 %v286
        %v457 = vunpack.c.l.b16 %v287
        %v458 = vunpack.c.h.b16 %v287
        %v459 = vunpack.c.l.b16 %v288
        %v460 = vunpack.c.h.b16 %v288
        %v461 = vunpack.c.l.b16 %v289
        %v462 = vunpack.c.h.b16 %v289
        %v463 = vunpack.c.l.b16 %v290
        %v464 = vunpack.c.h.b16 %v290
        %v465 = vunpack.c.l.b16 %v291
        %v466 = vunpack.c.h.b16 %v291
        %v467 = vunpack.c.l.b16 %v292
        %v468 = vunpack.c.h.b16 %v292
        %v469 = vpack.c.b16 %v379, %v373
        %v470 = vpack.c.b16 %v380, %v374
        %v471 = vpack.c.b16 %v381, %v375
        %v472 = vpack.c.b16 %v382, %v376
        %v473 = vpack.c.b16 %v383, %v377
        %v474 = vpack.c.b16 %v384, %v378
        %v475 = vpack.c.b16 %v391, %v385
        %v476 = vpack.c.b16 %v392, %v386
        %v477 = vpack.c.b16 %v393, %v387
        %v478 = vpack.c.b16 %v394, %v388
        %v479 = vpack.c.b16 %v395, %v389
        %v480 = vpack.c.b16 %v396, %v390
        %v481 = vpack.c.b16 %v403, %v397
        %v482 = vpack.c.b16 %v404, %v398
        %v483 = vpack.c.b16 %v405, %v399
        %v484 = vpack.c.b16 %v406, %v400
        %v485 = vpack.c.b16 %v407, %v401
        %v486 = vpack.c.b16 %v408, %v402
        %v487 = vpack.c.b16 %v415, %v409
        %v488 = vpack.c.b16 %v416, %v410
        %v489 = vpack.c.b16 %v417, %v411
        %v490 = vpack.c.b16 %v418, %v412
        %v491 = vpack.c.b16 %v419, %v413
        %v492 = vpack.c.b16 %v420, %v414
        %v493 = vpack.c.b16 %v427, %v421
        %v494 = vpack.c.b16 %v428, %v422
        %v495 = vpack.c.b16 %v429, %v423
        %v496 = vpack.c.b16 %v430, %v424
        %v497 = vpack.c.b16 %v431, %v425
        %v498 = vpack.c.b16 %v432, %v426
        %v499 = vpack.c.b16 %v439, %v433
        %v500 = vpack.c.b16 %v440, %v434
        %v501 = vpack.c.b16 %v441, %v435
        %v502 = vpack.c.b16 %v442, %v436
        %v503 = vpack.c.b16 %v443, %v437
        %v504 = vpack.c.b16 %v444, %v438
        %v505 = vpack.c.b16 %v451, %v445
        %v506 = vpack.c.b16 %v452, %v446
        %v507 = vpack.c.b16 %v453, %v447
        %v508 = vpack.c.b16 %v454, %v448
        %v509 = vpack.c.b16 %v455, %v449
        %v510 = vpack.c.b16 %v456, %v450
        %v511 = vpack.c.b16 %v463, %v457
        %v512 = vpack.c.b16 %v464, %v458
        %v513 = vpack.c.b16 %v465, %v459
        %v514 = vpack.c.b16 %v466, %v460
        %v515 = vpack.c.b16 %v467, %v461
        %v516 = vpack.c.b16 %v468, %v462
        %565 = vmatprep.subr.bf16.mxu0 %v470
        %566 = vmatpush1.bf16.msra.mxu0 %v469
        %567 = vmatprep.subr.bf16.mxu0 %v476
        %568 = vmatpush1.bf16.msra.mxu0 %v475
        %569 = vmatprep.subr.bf16.mxu0 %v482
        %570 = vmatpush1.bf16.msra.mxu0 %v481
        %571 = vmatprep.subr.bf16.mxu0 %v488
        %572 = vmatpush1.bf16.msra.mxu0 %v487
        %573 = vmatprep.subr.bf16.mxu0 %v494
        %574 = vmatpush1.bf16.msra.mxu0 %v493
        %575 = vmatprep.subr.bf16.mxu0 %v500
        %576 = vmatpush1.bf16.msra.mxu0 %v499
        %577 = vmatprep.subr.bf16.mxu0 %v506
        %578 = vmatpush1.bf16.msra.mxu0 %v505
        %579 = vmatprep.subr.bf16.mxu0 %v512
        %580 = vmatpush1.bf16.msra.mxu0 %v511
        %581 = vmatprep.subr.bf16.mxu0 0
        %582 = vmatpush1.bf16.msra.mxu0 0
        %583 = vmatprep.subr.bf16.mxu0 0
        %584 = vmatpush1.bf16.msra.mxu0 0
        %585 = vmatprep.subr.bf16.mxu0 0
        %586 = vmatpush1.bf16.msra.mxu0 0
        %587 = vmatprep.subr.bf16.mxu0 0
        %588 = vmatpush1.bf16.msra.mxu0 0
        %589 = vmatprep.subr.bf16.mxu0 0
        %590 = vmatpush1.bf16.msra.mxu0 0
        %591 = vmatprep.subr.bf16.mxu0 0
        %592 = vmatpush1.bf16.msra.mxu0 0
        %593 = vmatprep.subr.bf16.mxu0 0
        %594 = vmatpush1.bf16.msra.mxu0 0
        %595 = vmatprep.subr.bf16.mxu0 0
        %596 = vmatpush1.bf16.msra.mxu0 0
        %597 = vmatprep.mubr.bf16.mxu0 0
        %598 = vmatmul.mubr.bf16.gmra.mrb[0].mxu0 %v244
        %v599 = vpop.f32.mrb[0].mxu0
        %v600 = vadd.f32 %v298, %v599
        %v601 = vpop.f32.mrb[0].mxu0
        %v602 = vadd.f32 %v302, %v601
        %v603 = vpop.f32.mrb[0].mxu0
        %v604 = vpop.f32.mrb[0].mxu0
        %605 = vdwg.mxu0
        %606 = vmatprep.subr.bf16.mxu0 %v472
        %607 = vmatpush1.bf16.msra.mxu0 %v471
        %608 = vmatprep.subr.bf16.mxu0 %v478
        %609 = vmatpush1.bf16.msra.mxu0 %v477
        %610 = vmatprep.subr.bf16.mxu0 %v484
        %611 = vmatpush1.bf16.msra.mxu0 %v483
        %612 = vmatprep.subr.bf16.mxu0 %v490
        %613 = vmatpush1.bf16.msra.mxu0 %v489
        %614 = vmatprep.subr.bf16.mxu0 %v496
        %615 = vmatpush1.bf16.msra.mxu0 %v495
        %616 = vmatprep.subr.bf16.mxu0 %v502
        %617 = vmatpush1.bf16.msra.mxu0 %v501
        %618 = vmatprep.subr.bf16.mxu0 %v508
        %619 = vmatpush1.bf16.msra.mxu0 %v507
        %620 = vmatprep.subr.bf16.mxu0 %v514
        %621 = vmatpush1.bf16.msra.mxu0 %v513
        %622 = vmatprep.subr.bf16.mxu0 0
        %623 = vmatpush1.bf16.msra.mxu0 0
        %624 = vmatprep.subr.bf16.mxu0 0
        %625 = vmatpush1.bf16.msra.mxu0 0
        %626 = vmatprep.subr.bf16.mxu0 0
        %627 = vmatpush1.bf16.msra.mxu0 0
        %628 = vmatprep.subr.bf16.mxu0 0
        %629 = vmatpush1.bf16.msra.mxu0 0
        %630 = vmatprep.subr.bf16.mxu0 0
        %631 = vmatpush1.bf16.msra.mxu0 0
        %632 = vmatprep.subr.bf16.mxu0 0
        %633 = vmatpush1.bf16.msra.mxu0 0
        %634 = vmatprep.subr.bf16.mxu0 0
        %635 = vmatpush1.bf16.msra.mxu0 0
        %636 = vmatprep.subr.bf16.mxu0 0
        %637 = vmatpush1.bf16.msra.mxu0 0
        %638 = vmatprep.mubr.bf16.mxu0 0
        %639 = vmatmul.mubr.bf16.gmra.mrb[0].mxu0 %v244
        %v640 = vpop.f32.mrb[0].mxu0
        %v641 = vadd.f32 %v306, %v640
        %v642 = vpop.f32.mrb[0].mxu0
        %v643 = vadd.f32 %v310, %v642
        %v644 = vpop.f32.mrb[0].mxu0
        %v645 = vpop.f32.mrb[0].mxu0
        %646 = vdwg.mxu0
        %647 = vmatprep.subr.bf16.mxu0 %v474
        %648 = vmatpush1.bf16.msra.mxu0 %v473
        %649 = vmatprep.subr.bf16.mxu0 %v480
        %650 = vmatpush1.bf16.msra.mxu0 %v479
        %651 = vmatprep.subr.bf16.mxu0 %v486
        %652 = vmatpush1.bf16.msra.mxu0 %v485
        %653 = vmatprep.subr.bf16.mxu0 %v492
        %654 = vmatpush1.bf16.msra.mxu0 %v491
        %655 = vmatprep.subr.bf16.mxu0 %v498
        %656 = vmatpush1.bf16.msra.mxu0 %v497
        %657 = vmatprep.subr.bf16.mxu0 %v504
        %658 = vmatpush1.bf16.msra.mxu0 %v503
        %659 = vmatprep.subr.bf16.mxu0 %v510
        %660 = vmatpush1.bf16.msra.mxu0 %v509
        %661 = vmatprep.subr.bf16.mxu0 %v516
        %662 = vmatpush1.bf16.msra.mxu0 %v515
        %663 = vmatprep.subr.bf16.mxu0 0
        %664 = vmatpush1.bf16.msra.mxu0 0
        %665 = vmatprep.subr.bf16.mxu0 0
        %666 = vmatpush1.bf16.msra.mxu0 0
        %667 = vmatprep.subr.bf16.mxu0 0
        %668 = vmatpush1.bf16.msra.mxu0 0
        %669 = vmatprep.subr.bf16.mxu0 0
        %670 = vmatpush1.bf16.msra.mxu0 0
        %671 = vmatprep.subr.bf16.mxu0 0
        %672 = vmatpush1.bf16.msra.mxu0 0
        %673 = vmatprep.subr.bf16.mxu0 0
        %674 = vmatpush1.bf16.msra.mxu0 0
        %675 = vmatprep.subr.bf16.mxu0 0
        %676 = vmatpush1.bf16.msra.mxu0 0
        %677 = vmatprep.subr.bf16.mxu0 0
        %678 = vmatpush1.bf16.msra.mxu0 0
        %679 = vmatprep.mubr.bf16.mxu0 0
        %680 = vmatmul.mubr.bf16.gmra.mrb[0].mxu0 %v244
        %v681 = vpop.f32.mrb[0].mxu0
        %v682 = vadd.f32 %v314, %v681
        %v683 = vpop.f32.mrb[0].mxu0
        %v684 = vadd.f32 %v318, %v683
        %v685 = vpop.f32.mrb[0].mxu0
        %v686 = vpop.f32.mrb[0].mxu0
        %687 = vdwg.mxu0
        %v688 = vpack.c.bf16 %v600, %v600
        %v689 = vpack.c.bf16 %v602, %v602
        %v690 = vpack.c.bf16 %v641, %v641
        %v691 = vpack.c.bf16 %v643, %v643
        %v692 = vpack.c.bf16 %v682, %v682
        %v693 = vpack.c.bf16 %v684, %v684
        %v697 = vunpack.c.l.b16 %v688
        %v698 = vunpack.c.l.b16 %v689
        %v699 = vunpack.c.l.b16 %v690
        %v700 = vpack.c.b16 %v698, %v697
        %v701 = vpack.c.b16 %v699, %v699
        %704 = vst [vmem:[%s233] sm:$0xff] %v700
        %705 = vst [vmem:[%s233 + $0x8] sm:$0xf] %v701
        %v709 = vunpack.c.l.b16 %v691
        %v710 = vunpack.c.l.b16 %v692
        %v711 = vunpack.c.l.b16 %v693
        %v712 = vpack.c.b16 %v710, %v709
        %v713 = vpack.c.b16 %v711, %v711
        %716 = vst [vmem:[%s240] sm:$0xff] %v712
        %717 = vst [vmem:[%s240 + $0x8] sm:$0xf] %v713
        %s718 = sand.u32 %s102, 1
        %s719 = scalar_lea.sflag [#allocation4], %s718
        %s720 = sand.u32 %s102, 1
        %s721 = smul.addr %s720, 12
        %s722 = scalar_lea.vmem [#allocation7], %s721
        %s723 = sand.u32 %s130, 1
        %s724 = scalar_lea.sflag [#allocation9], %s723
        %s725 = sand.u32 %s130, 1
        %s726 = smul.addr %s725, 12
        %s727 = scalar_lea.vmem [#allocation8], %s726
        // Predicated region
        $region41: #{tpu_custom_call.1} parent=31 // pred_check
          %p728 = pneg %p112
        $region42: #{tpu_custom_call.1} parent=31 // pred_check_branch
          %730 = sbr.rel (%p728) target = $region44
        $region43: #{tpu_custom_call.1} parent=31 // pred_region
          %s732 = ssub.s32 192, 192
          %733 = vsyncadd %s719, %s732
          %s734 = smul.addr %s26, 3
          %s735 = smul.addr %s734, 64
          %s736 = scalar_lea.hbm %s3, %s735
          %s738 = sshll.u32 %s722, 4
          %s739 = int_to_ptr.vmem [resolvable:$true] %s738
          %741 = dma.vmem_to_hbm [thread:$0]  %s739, 192, %s736, %s719
        $region44: #{tpu_custom_call.1} parent=31 // pred_fallthru
          _
        // Predicated region
        $region45: #{tpu_custom_call.1} parent=31 // pred_check
          %p742 = pneg %p140
        $region46: #{tpu_custom_call.1} parent=31 // pred_check_branch
          %744 = sbr.rel (%p742) target = $region48
        $region47: #{tpu_custom_call.1} parent=31 // pred_region
          %s745 = ssub.s32 9, %s26
          %s747 = ssub.s32 192, 192
          %748 = vsyncadd %s724, %s747
          %s749 = smul.addr %s745, 3
          %s750 = smul.addr %s749, 64
          %s751 = scalar_lea.hbm %s4, %s750
          %s753 = sshll.u32 %s727, 4
          %s754 = int_to_ptr.vmem [resolvable:$true] %s753
          %756 = dma.vmem_to_hbm [thread:$0]  %s754, 192, %s751, %s724
        $region48: #{tpu_custom_call.1} parent=31 // pred_fallthru
          _
      $region32: #{tpu_custom_call.1} parent=5 // pred_fallthru
        _
      %p757 = scmp.le.s32.totalorder 2, %s21
      // Predicated region
      $region49: #{tpu_custom_call.1} parent=5 // pred_check
        %p758 = pneg %p757
      $region50: #{tpu_custom_call.1} parent=5 // pred_check_branch
        %760 = sbr.rel (%p758) target = $region52
      $region51: #{tpu_custom_call.1} parent=5 // pred_region
        %s761 = ssub.s32 %s21, 2
        // Predicated region
        $region53: #{tpu_custom_call.1} parent=51 // pred_check
          %p762 = pneg %p118
        $region54: #{tpu_custom_call.1} parent=51 // pred_check_branch
          %764 = sbr.rel (%p762) target = $region56
        $region55: #{tpu_custom_call.1} parent=51 // pred_region
          %s765 = sand.u32 %s103, 1
          %s766 = scalar_lea.sflag [#allocation4], %s765
          %s767 = sand.u32 %s103, 1
          %s768 = smul.addr %s767, 12
          %s769 = scalar_lea.vmem [#allocation7], %s768
          %770 = dma.done %s766, 192
        $region56: #{tpu_custom_call.1} parent=51 // pred_fallthru
          _
        // Predicated region
        $region57: #{tpu_custom_call.1} parent=51 // pred_check
          %p771 = pneg %p146
        $region58: #{tpu_custom_call.1} parent=51 // pred_check_branch
          %773 = sbr.rel (%p771) target = $region60
        $region59: #{tpu_custom_call.1} parent=51 // pred_region
          %s774 = sand.u32 %s131, 1
          %s775 = scalar_lea.sflag [#allocation9], %s774
          %s776 = sand.u32 %s131, 1
          %s777 = smul.addr %s776, 12
          %s778 = scalar_lea.vmem [#allocation8], %s777
          %779 = dma.done %s775, 192
        $region60: #{tpu_custom_call.1} parent=51 // pred_fallthru
          _
      $region52: #{tpu_custom_call.1} parent=5 // pred_fallthru
        _
    $region6: #{tpu_custom_call.1} parent=1 // loop_footer
      %s25 = sadd.s32 1, %s21
    $region7: #{tpu_custom_call.1} parent=1 // loop_footer_branch
      %20 = sbr.rel target = $region3
    $region8: #{tpu_custom_call.1} parent=1 // loop_exit
      _
    %780 = vsyncpa [#allocation3], 1
    %s781 = scalar_lea.sflag [#allocation3], 1
    %782 = vsyncpa %s781, 1
    %783 = vsyncpa [#allocation6], 1
    %784 = vsyncpa [#allocation4], 1
    %s785 = scalar_lea.sflag [#allocation4], 1
    %786 = vsyncpa %s785, 1
    %787 = vsyncpa [#allocation9], 1
    %s788 = scalar_lea.sflag [#allocation9], 1
    %789 = vsyncpa %s788, 1

</llo_original>
